<compile_context>
chip_gen: v5e
topology: v5e:2x2
jax: 0.10.0
libtpu: 0.0.40
codegen_flags: <defaults>
</compile_context>

<pallas_src>
import numpy as np
import jax
import jax.numpy as jnp
from jax.experimental import pallas as pl
from jax.experimental.pallas import tpu as pltpu


# -----------------------------------------------------------------------------
# Host-side precompute (mirrors the PyTorch module __init__, numpy at trace time)
# -----------------------------------------------------------------------------
def legpoly(mmax, lmax, x, norm="ortho", inverse=False, csphase=True):
    nmax = max(mmax, lmax)
    vdm = np.zeros((nmax, nmax, len(x)), dtype=np.float64)
    norm_factor = 1.0 if norm == "ortho" else np.sqrt(4 * np.pi)
    norm_factor = 1.0 / norm_factor if inverse else norm_factor
    vdm[0, 0, :] = norm_factor / np.sqrt(4 * np.pi)
    for l in range(1, nmax):
        vdm[l - 1, l, :] = np.sqrt(2 * l + 1) * x * vdm[l - 1, l - 1, :]
        vdm[l, l, :] = np.sqrt(np.abs((2 * l + 1) * (1 + x) * (1 - x) / 2 / l)) * vdm[l - 1, l - 1, :]
    for l in range(2, nmax):
        for m in range(0, l - 1):
            vdm[m, l, :] = (
                x * np.sqrt((2 * l - 1) / (l - m) * (2 * l + 1) / (l + m)) * vdm[m, l - 1, :]
                - np.sqrt((l + m - 1) / (l - m) * (2 * l + 1) / (2 * l - 3) * (l - m - 1) / (l + m)) * vdm[m, l - 2, :]
            )
    if norm == "schmidt":
        for l in range(0, nmax):
            if inverse:
                vdm[:, l, :] = vdm[:, l, :] * np.sqrt(2 * l + 1)
            else:
                vdm[:, l, :] = vdm[:, l, :] / np.sqrt(2 * l + 1)
    vdm = vdm[:mmax, :lmax]
    if csphase:
        for m in range(1, mmax, 2):
            vdm[m] *= -1
    return vdm


def _precompute_legpoly(mmax, lmax, t, norm="ortho", inverse=False, csphase=True):
    return legpoly(mmax, lmax, np.cos(t), norm=norm, inverse=inverse, csphase=csphase)


def make_isht_weights(nlat, nlon, norm="ortho", csphase=True):
    """Legendre-Gauss grid variant of the module __init__: returns (weights, lmax, mmax)."""
    cost, _ = np.polynomial.legendre.leggauss(nlat)   # nodes on [-1, 1]
    lmax = nlat
    mmax = nlon // 2 + 1
    t = np.flip(np.arccos(cost))
    pct = _precompute_legpoly(mmax, lmax, t, norm=norm, inverse=True, csphase=csphase)
    return np.ascontiguousarray(pct), lmax, mmax       # (mmax, lmax, nlat)


# -----------------------------------------------------------------------------
# Pallas kernels
# -----------------------------------------------------------------------------
def _legendre_kernel(x_ref, w_ref, z_ref):
    # x_ref: (tm, 2B, Lp)   [Re stacked over Im along the batch axis]
    # w_ref: (tm, Lp, Kp)
    # z_ref: (tm, 2B, Kp)   z[m, b', k] = sum_l x[m, b', l] * w[m, l, k]
    z_ref[...] = jax.lax.dot_general(
        x_ref[...], w_ref[...],
        dimension_numbers=(((2,), (1,)), ((0,), (0,))),
        preferred_element_type=jnp.float32)


def _dft_kernel(z_ref, cs_ref, o_ref):
    # Plain deep-contraction matmul: out[(b,k), n] += Z[(b,k), m'] @ CS[m', n]
    # where m' spans [Re m's | Im m's] and CS = [C ; -S]. Output block is the f32
    # accumulator itself (resident across the innermost reduction axis).
    @pl.when(pl.program_id(2) == 0)
    def _init():
        o_ref[...] = jnp.zeros_like(o_ref)

    o_ref[...] += jnp.dot(z_ref[...], cs_ref[...], preferred_element_type=jnp.float32)


# -----------------------------------------------------------------------------
# Wrapper
# -----------------------------------------------------------------------------
def _round_up(x, m):
    return (x + m - 1) // m * m


def _pick_tile(total, t_max, min_tiles=1):
    """Largest multiple of 128 <= t_max that divides `total` (a multiple of 128),
    giving at least `min_tiles` tiles when possible."""
    t_max = max(128, (t_max // 128) * 128)
    for cand in range(t_max, 127, -128):
        if total % cand == 0 and total // cand >= min_tiles:
            return cand
    return 128


def inverse_real_sht(x, weights, nlon, norm="ortho", *,
                     compute_dtype=jnp.bfloat16, tm_leg=8,
                     km_max=256, tn_max=1024, tr_max=512):
    """x: complex (..., lmax, mmax); weights: (mmax, lmax, nlat). Returns (..., nlat, nlon) f32."""
    *lead, L, M = x.shape
    B = int(np.prod(lead)) if lead else 1
    x = x.reshape(B, L, M)
    Mw, Lw, K = weights.shape
    assert (Mw, Lw) == (M, L), "weights must have shape (mmax, lmax, nlat)"
    N = int(nlon)
    assert M <= N // 2 + 1

    # --- exact inverse real-DFT matrices (float64 on host) -----------------------
    m_idx = np.arange(M, dtype=np.float64)[:, None]
    n_idx = np.arange(N, dtype=np.float64)[None, :]
    ang = 2.0 * np.pi * m_idx * n_idx / N
    if norm == "ortho":
        scale = 1.0 / np.sqrt(N)
    elif norm == "forward":
        scale = 1.0
    else:  # None / "backward"
        scale = 1.0 / N
    coef = np.full((M, 1), 2.0)
    coef[0, 0] = 1.0
    has_nyquist = (N % 2 == 0) and (M - 1 >= N // 2)
    if has_nyquist:
        coef[N // 2, 0] = 1.0
    C = scale * coef * np.cos(ang)
    S = scale * coef * np.sin(ang)
    S[0, :] = 0.0                      # irfft discards Im of the DC bin
    if has_nyquist:
        S[N // 2, :] = 0.0             # ... and of the Nyquist bin

    # --- padding / tile plan (zero padding is mathematically exact) --------------
    tm_leg = max(8, _round_up(tm_leg, 8))
    M_pad = _round_up(M, tm_leg)
    L_pad = _round_up(L, 8)
    K_pad = _round_up(K, 8)

    R = B * K_pad                                   # output rows (b, k) flattened
    tr = min(_round_up(tr_max, 8), _round_up(R, 8))
    R_pad = _round_up(R, tr)

    KM = 2 * M_pad                                  # contraction depth [Re | Im]
    km = min(_round_up(km_max, 8), KM)
    KM_pad = _round_up(KM, km)

    N_pad = _round_up(N, 128)                       # lane-dense output
    tn = _pick_tile(N_pad, min(tn_max, N_pad),
                    min_tiles=2 if N_pad >= 256 else 1)   # keep >=2 nlon tiles (megacore)

    in_bytes = jnp.dtype(compute_dtype).itemsize
    vmem_limit = 48 * 1024 * 1024                   # safe on v7x (64 MiB physical per TC)

    # =========================== stage 1: Legendre synthesis ======================
    xr = jnp.real(x)
    xi = jnp.imag(x)
    xs = jnp.concatenate([xr, xi], axis=0)                          # (2B, L, M)
    xs = jnp.transpose(xs, (2, 0, 1))                               # (M, 2B, L) m-leading
    xs = jnp.pad(xs, ((0, M_pad - M), (0, 0), (0, L_pad - L))).astype(compute_dtype)
    w_p = jnp.pad(jnp.asarray(weights, jnp.float32),
                  ((0, M_pad - M), (0, L_pad - L), (0, K_pad - K))).astype(compute_dtype)

    leg_flops = 4 * M * B * L * K
    leg_bytes = int((xs.size + w_p.size) * in_bytes + M_pad * 2 * B * K_pad * 4)

    z = pl.pallas_call(
        _legendre_kernel,
        out_shape=jax.ShapeDtypeStruct((M_pad, 2 * B, K_pad), jnp.float32),
        grid_spec=pltpu.PrefetchScalarGridSpec(
            num_scalar_prefetch=0,
            grid=(M_pad // tm_leg,),
            in_specs=[
                pl.BlockSpec((tm_leg, 2 * B, L_pad), lambda mi: (mi, 0, 0)),
                pl.BlockSpec((tm_leg, L_pad, K_pad), lambda mi: (mi, 0, 0)),
            ],
            out_specs=pl.BlockSpec((tm_leg, 2 * B, K_pad), lambda mi: (mi, 0, 0)),
        ),
        compiler_params=pltpu.CompilerParams(
            dimension_semantics=("parallel",),
            vmem_limit_bytes=vmem_limit,
        ),
        cost_estimate=pl.CostEstimate(flops=leg_flops, transcendentals=0,
                                      bytes_accessed=leg_bytes),
    )(xs, w_p)

    # --- one-time layout plumbing (wrapper-side, NOT per grid step) ---------------
    zr = z[:, :B]                                                   # (M_pad, B, K_pad)
    zi = z[:, B:]
    zcat = jnp.concatenate([zr, zi], axis=0)                        # (2*M_pad, B, K_pad)
    z2d = jnp.transpose(zcat, (1, 2, 0)).reshape(R, KM)             # (B*K_pad, 2*M_pad)
    z2d = jnp.pad(z2d, ((0, R_pad - R), (0, KM_pad - KM))).astype(compute_dtype)

    # Fused DFT operand CS = [C ; -S], zero-padded to (KM_pad, N_pad).
    CS = np.zeros((KM_pad, N_pad), dtype=np.float64)
    CS[:M, :N] = C
    CS[M_pad:M_pad + M, :N] = -S
    cs_p = jnp.asarray(CS, dtype=compute_dtype)

    # =========================== stage 2: inverse real DFT ========================
    n_tiles_r = R_pad // tr
    n_tiles_n = N_pad // tn
    n_tiles_k = KM_pad // km

    dft_flops = 2 * R_pad * KM_pad * N_pad
    dft_bytes = int((R_pad * KM_pad * n_tiles_n + KM_pad * N_pad * n_tiles_r) * in_bytes
                    + R_pad * N_pad * 4)

    out2d = pl.pallas_call(
        _dft_kernel,
        out_shape=jax.ShapeDtypeStruct((R_pad, N_pad), jnp.float32),
        grid_spec=pltpu.PrefetchScalarGridSpec(
            num_scalar_prefetch=0,
            grid=(n_tiles_r, n_tiles_n, n_tiles_k),
            in_specs=[
                pl.BlockSpec((tr, km), lambda ri, ni, ki: (ri, ki)),   # Z rows
                pl.BlockSpec((km, tn), lambda ri, ni, ki: (ki, ni)),   # [C; -S]
            ],
            out_specs=pl.BlockSpec((tr, tn), lambda ri, ni, ki: (ri, ni)),
        ),
        compiler_params=pltpu.CompilerParams(
            dimension_semantics=("parallel", "parallel", "arbitrary"),
            vmem_limit_bytes=vmem_limit,
        ),
        cost_estimate=pl.CostEstimate(flops=dft_flops, transcendentals=0,
                                      bytes_accessed=dft_bytes),
    )(z2d, cs_p)

    out = out2d[:R, :].reshape(B, K_pad, N_pad)[:, :K, :N]
    return out.reshape(*lead, K, N)


# -----------------------------------------------------------------------------
# Demo / correctness check
# -----------------------------------------------------------------------------
if __name__ == "__main__":
    nlat, nlon = 16, 32
    B = 2
    norm = "ortho"

    # Module precompute (Legendre-Gauss grid).
    pct, lmax, mmax = make_isht_weights(nlat, nlon, norm=norm, csphase=True)
    weights = jnp.asarray(pct, dtype=jnp.float32)          # (mmax, lmax, nlat) = (17, 16, 16)

    key = jax.random.PRNGKey(0)
    kr, ki = jax.random.split(key)
    xr = jax.random.normal(kr, (B, lmax, mmax), dtype=jnp.float32)
    xi = jax.random.normal(ki, (B, lmax, mmax), dtype=jnp.float32)
    x = (xr + 1j * xi).astype(jnp.complex64)                # (2, 16, 17) complex

    # Reference: float64 numpy einsum + irfft (same math as the torch forward).
    x_np = np.asarray(x).astype(np.complex128)
    w_np = np.asarray(weights).astype(np.float64)
    rl = np.einsum("blm,mlk->bkm", x_np.real, w_np)
    im = np.einsum("blm,mlk->bkm", x_np.imag, w_np)
    ref = np.fft.irfft(rl + 1j * im, n=nlon, axis=-1, norm=norm)

    # f32 compute path: exact-math check.
    out32 = jax.block_until_ready(
        inverse_real_sht(x, weights, nlon, norm=norm, compute_dtype=jnp.float32))
    assert out32.shape == (B, nlat, nlon)
    assert np.allclose(np.asarray(out32), ref, atol=1e-3, rtol=1e-3)

    # Default bf16 operands (f32 MXU accumulation): relative-norm tolerance check.
    out_bf = jax.block_until_ready(inverse_real_sht(x, weights, nlon, norm=norm))
    rel = np.linalg.norm(np.asarray(out_bf) - ref) / np.linalg.norm(ref)
    assert out_bf.shape == (B, nlat, nlon)
    assert rel < 3e-2, rel

    print("KERNEL_OK")
</pallas_src>

<mosaic_0001>
module attributes {stable_mosaic.version = 11 : i64} {
  func.func @_legendre_kernel(%arg0: i32, %arg1: memref<8x4x16xf32, #tpu.memory_space<vmem>>, %arg2: memref<8x16x16xf32, #tpu.memory_space<vmem>>, %arg3: memref<8x4x16xf32, #tpu.memory_space<vmem>>) attributes {dimension_semantics = [#tpu.dimension_semantics<parallel>], iteration_bounds = array<i64: 3>, scalar_prefetch = 0 : i64, scratch_operands = 0 : i64, tpu.core_type = #tpu.core_type<tc>, window_params = [{transform_indices = @transform_0, window_bounds = array<i64: 8, 4, 16>}, {transform_indices = @transform_1, window_bounds = array<i64: 8, 16, 16>}, {transform_indices = @transform_2, window_bounds = array<i64: 8, 4, 16>}]} {
    %c0 = arith.constant 0 : index
    %c0_0 = arith.constant 0 : index
    %c0_1 = arith.constant 0 : index
    %0 = vector.load %arg1[%c0, %c0_0, %c0_1] : memref<8x4x16xf32, #tpu.memory_space<vmem>>, vector<8x4x16xf32>
    %c0_2 = arith.constant 0 : index
    %c0_3 = arith.constant 0 : index
    %c0_4 = arith.constant 0 : index
    %1 = vector.load %arg2[%c0_2, %c0_3, %c0_4] : memref<8x16x16xf32, #tpu.memory_space<vmem>>, vector<8x16x16xf32>
    %cst = arith.constant dense<0.000000e+00> : vector<8x4x16xf32>
    %2 = tpu.matmul %0, %1, %cst {dimension_numbers = #tpu.dot_dimension_numbers<[2], [1], [1], [2], [0, 0, 0, 1, 1, 2], [0], [0]>} : vector<8x4x16xf32>, vector<8x16x16xf32>, vector<8x4x16xf32> -> vector<8x4x16xf32>
    %c0_5 = arith.constant 0 : index
    %c0_6 = arith.constant 0 : index
    %c0_7 = arith.constant 0 : index
    %3 = vector.load %arg3[%c0_5, %c0_6, %c0_7] : memref<8x4x16xf32, #tpu.memory_space<vmem>>, vector<8x4x16xf32>
    tpu.vector_store %arg3[%c0_5, %c0_6, %c0_7], %2 {strides = array<i32>} : memref<8x4x16xf32, #tpu.memory_space<vmem>>, vector<8x4x16xf32>,
    return
  }
  func.func @transform_0(%arg0: i32) -> (i32, i32, i32) {
    %c0_i32 = arith.constant 0 : i32
    %c0_i32_0 = arith.constant 0 : i32
    %c0_i32_1 = arith.constant 0 : i32
    return %arg0, %c0_i32, %c0_i32_0 : i32, i32, i32
  }
  func.func @transform_1(%arg0: i32) -> (i32, i32, i32) {
    %c0_i32 = arith.constant 0 : i32
    %c0_i32_0 = arith.constant 0 : i32
    %c0_i32_1 = arith.constant 0 : i32
    return %arg0, %c0_i32, %c0_i32_0 : i32, i32, i32
  }
  func.func @transform_2(%arg0: i32) -> (i32, i32, i32) {
    %c0_i32 = arith.constant 0 : i32
    %c0_i32_0 = arith.constant 0 : i32
    %c0_i32_1 = arith.constant 0 : i32
    return %arg0, %c0_i32, %c0_i32_0 : i32, i32, i32
  }
}

</mosaic_0001>

<llo_original>
// kernel: tpu_custom_call.1
$region0: #{tpu_custom_call.1}
  #allocation0 [shape = 'u32[]', space=smem, size = 0x4, offset = 0x4, fixed_abs, tag = 'smem constant byte address 0x4 - core index']
  #allocation1 [shape = 'u32[72,128]{1,0:T(1,128)}', space=vmem, size = 0x9000, scoped, tag = 'internal scratch']
  %s0 = inlined_call_operand.vmem [shape: f32[24,4,16], index: 0, kind: input, shape index: {}]
  %s1 = inlined_call_operand.vmem [shape: f32[24,16,16], index: 1, kind: input, shape index: {}]
  %s2 = inlined_call_operand.vmem [shape: f32[24,4,16], index: 2, kind: output, shape index: {}]
  %s3 = sld [smem:[#allocation0]]
  $region41: #{tpu_custom_call.1} parent=0
    _
  %s5 = ssub.s32 1, %s3
  %s6 = scalar_select 0, %s5, %s3
  loop: start=0, step=1, limit=5
  $region2: #{tpu_custom_call.1} parent=0 // loop_pre_header
    _
  $region3: #{tpu_custom_call.1} parent=0 // loop_header
    %s8 = sphi 0, %s12
    %p9 = scmp.ge.s32.totalorder %s8, 5
    %s18 = sphi 0, %s20
    %s21 = sphi 0, %s18
    %s22 = sphi 0, %s21
    %s38 = sphi 0, %s22
    %s44 = sphi 0, %s46
    %s47 = sphi 0, %s44
    %s48 = sphi 0, %s47
    %s64 = sphi 0, %s48
    %s70 = sphi 0, %s72
    %s73 = sphi 0, %s70
    %s74 = sphi 0, %s73
    %s90 = sphi 0, %s74
  $region4: #{tpu_custom_call.1} parent=0 // loop_header_branch
    %11 = sbr.rel (%p9) target = $region8
  $region5: #{tpu_custom_call.1} parent=0 // loop_body
    %s13 = ssub.s32 %s8, 1
    %s14 = ssub.s32 %s8, 2
    %s15 = sadd.s32 %s8, 1
    %s16 = ssub.s32 %s8, %s15
    %p17 = scmp.eq.s32.totalorder %s16, 0
    %s19 = sadd.s32 %s18, 1
    %s20 = scalar_select %p17, %s18, %s19
    %p23 = pneg %p17
    %p24 = scmp.eq.s32.totalorder %s8, 2
    %p25 = por %p23, %p24
    %p26 = scmp.ne.s32.totalorder %s18, %s21
    %p27 = scmp.eq.s32.totalorder %s8, 0
    %p28 = por %p26, %p27
    %p29 = scmp.ne.s32.totalorder %s18, %s21
    %p30 = scmp.eq.s32.totalorder %s13, 2
    %p31 = por %p29, %p30
    %p32 = scmp.ne.s32.totalorder %s21, %s22
    %p33 = scmp.eq.s32.totalorder %s13, 0
    %p34 = por %p32, %p33
    %p35 = scmp.ne.s32.totalorder %s21, %s22
    %p36 = scmp.eq.s32.totalorder %s14, 2
    %p37 = por %p35, %p36
    %p39 = scmp.ne.s32.totalorder %s22, %s38
    %p40 = scmp.eq.s32.totalorder %s14, 0
    %p41 = por %p39, %p40
    %s42 = ssub.s32 %s8, %s15
    %p43 = scmp.eq.s32.totalorder %s42, 0
    %s45 = sadd.s32 %s44, 1
    %s46 = scalar_select %p43, %s44, %s45
    %p49 = pneg %p43
    %p50 = scmp.eq.s32.totalorder %s8, 2
    %p51 = por %p49, %p50
    %p52 = scmp.ne.s32.totalorder %s44, %s47
    %p53 = scmp.eq.s32.totalorder %s8, 0
    %p54 = por %p52, %p53
    %p55 = scmp.ne.s32.totalorder %s44, %s47
    %p56 = scmp.eq.s32.totalorder %s13, 2
    %p57 = por %p55, %p56
    %p58 = scmp.ne.s32.totalorder %s47, %s48
    %p59 = scmp.eq.s32.totalorder %s13, 0
    %p60 = por %p58, %p59
    %p61 = scmp.ne.s32.totalorder %s47, %s48
    %p62 = scmp.eq.s32.totalorder %s14, 2
    %p63 = por %p61, %p62
    %p65 = scmp.ne.s32.totalorder %s48, %s64
    %p66 = scmp.eq.s32.totalorder %s14, 0
    %p67 = por %p65, %p66
    %s68 = ssub.s32 %s8, %s15
    %p69 = scmp.eq.s32.totalorder %s68, 0
    %s71 = sadd.s32 %s70, 1
    %s72 = scalar_select %p69, %s70, %s71
    %p75 = pneg %p69
    %p76 = scmp.eq.s32.totalorder %s8, 2
    %p77 = por %p75, %p76
    %p78 = scmp.ne.s32.totalorder %s70, %s73
    %p79 = scmp.eq.s32.totalorder %s8, 0
    %p80 = por %p78, %p79
    %p81 = scmp.ne.s32.totalorder %s70, %s73
    %p82 = scmp.eq.s32.totalorder %s13, 2
    %p83 = por %p81, %p82
    %p84 = scmp.ne.s32.totalorder %s73, %s74
    %p85 = scmp.eq.s32.totalorder %s13, 0
    %p86 = por %p84, %p85
    %p87 = scmp.ne.s32.totalorder %s73, %s74
    %p88 = scmp.eq.s32.totalorder %s14, 2
    %p89 = por %p87, %p88
    %p91 = scmp.ne.s32.totalorder %s74, %s90
    %p92 = scmp.eq.s32.totalorder %s14, 0
    %p93 = por %p91, %p92
    %p94 = scmp.le.s32.totalorder 1, %s8
    %p95 = scmp.lt.s32.totalorder %s8, 4
    %p96 = pnand %p94, %p95
    %p97 = pneg %p96
    // Predicated region
    $region9: #{tpu_custom_call.1} parent=5 // pred_check
      _
    $region10: #{tpu_custom_call.1} parent=5 // pred_check_branch
      %99 = sbr.rel (%p96) target = $region12
    $region11: #{tpu_custom_call.1} parent=5 // pred_region
      %s100 = ssub.s32 %s8, 1
    $region12: #{tpu_custom_call.1} parent=5 // pred_fallthru
      _
    %p101 = scmp.lt.s32.totalorder %s8, 3
    // Predicated region
    $region13: #{tpu_custom_call.1} parent=5 // pred_check
      %p102 = pneg %p101
    $region14: #{tpu_custom_call.1} parent=5 // pred_check_branch
      %104 = sbr.rel (%p102) target = $region16
    $region15: #{tpu_custom_call.1} parent=5 // pred_region
      // Predicated region
      $region17: #{tpu_custom_call.1} parent=15 // pred_check
        %p105 = pneg %p28
      $region18: #{tpu_custom_call.1} parent=15 // pred_check_branch
        %107 = sbr.rel (%p105) target = $region20
      $region19: #{tpu_custom_call.1} parent=15 // pred_region
        %s108 = smul.u32 8, %s8
        %p109 = scmp.lt.s32.totalorder %s108, 23
        %s110 = scalar_select %p109, %s108, 23
        %s111 = smul.addr %s110, 4
        %s112 = scalar_lea.vmem %s0, %s111
        %s113 = smul.u32 8, %s8
      $region20: #{tpu_custom_call.1} parent=15 // pred_fallthru
        _
      // Predicated region
      $region21: #{tpu_custom_call.1} parent=15 // pred_check
        %p114 = pneg %p54
      $region22: #{tpu_custom_call.1} parent=15 // pred_check_branch
        %116 = sbr.rel (%p114) target = $region24
      $region23: #{tpu_custom_call.1} parent=15 // pred_region
        %s117 = smul.u32 8, %s8
        %p118 = scmp.lt.s32.totalorder %s117, 23
        %s119 = scalar_select %p118, %s117, 23
        %s120 = smul.addr %s119, 2
        %s121 = smul.addr %s120, 8
        %s122 = scalar_lea.vmem %s1, %s121
        %s123 = smul.u32 8, %s8
      $region24: #{tpu_custom_call.1} parent=15 // pred_fallthru
        _
    $region16: #{tpu_custom_call.1} parent=5 // pred_fallthru
      _
    %p124 = scmp.le.s32.totalorder 1, %s8
    %p125 = scmp.lt.s32.totalorder %s8, 4
    %p126 = pnand %p124, %p125
    %p127 = pneg %p126
    // Predicated region
    $region25: #{tpu_custom_call.1} parent=5 // pred_check
      _
    $region26: #{tpu_custom_call.1} parent=5 // pred_check_branch
      %129 = sbr.rel (%p126) target = $region28
    $region27: #{tpu_custom_call.1} parent=5 // pred_region
      %s130 = ssub.s32 %s8, 1
      %s131 = smul.u32 8, %s13
      %p132 = scmp.lt.s32.totalorder %s131, 23
      %s133 = scalar_select %p132, %s131, 23
      %s134 = smul.addr %s133, 4
      %s135 = scalar_lea.vmem %s0, %s134
      %p136 = pneg %p34
      %p137 = pneg %p31
      %s138 = smul.u32 8, %s13
      %p139 = scmp.lt.s32.totalorder %s138, 23
      %s140 = scalar_select %p139, %s138, 23
      %s141 = smul.addr %s140, 2
      %s142 = smul.addr %s141, 8
      %s143 = scalar_lea.vmem %s1, %s142
      %p144 = pneg %p60
      %p145 = pneg %p57
      %p146 = pneg %p86
      %p147 = pneg %p83
      %s148 = smul.u32 8, %s13
      %p149 = scmp.lt.s32.totalorder %s148, 23
      %s150 = scalar_select %p149, %s148, 23
      %s151 = smul.addr %s150, 4
      %s152 = scalar_lea.vmem %s2, %s151
      %s153 = smul.u32 8, %s13
      %p154 = scmp.lt.s32.totalorder %s153, 23
      %s155 = scalar_select %p154, %s153, 23
      %s156 = smul.addr %s155, 4
      %s157 = scalar_lea.vmem %s0, %s156
      %s158 = smul.u32 8, %s13
      %s159 = smul.u32 8, %s13
      %p160 = scmp.lt.s32.totalorder %s159, 23
      %s161 = scalar_select %p160, %s159, 23
      %s162 = smul.addr %s161, 2
      %s163 = smul.addr %s162, 8
      %s164 = scalar_lea.vmem %s1, %s163
      %s165 = smul.u32 8, %s13
      %s166 = smul.u32 8, %s13
      %p167 = scmp.lt.s32.totalorder %s166, 23
      %s168 = scalar_select %p167, %s166, 23
      %s169 = smul.addr %s168, 4
      %s170 = scalar_lea.vmem %s2, %s169
      %s171 = smul.u32 8, %s13
      %v172 = vld [vmem:[%s157] sm:$0xf]
      %v173 = vld [vmem:[%s157 + $0x4] sm:$0xf]
      %v174 = vld [vmem:[%s157 + $0x8] sm:$0xf]
      %v175 = vld [vmem:[%s157 + $0xc] sm:$0xf]
      %v176 = vld [vmem:[%s157 + $0x10] sm:$0xf]
      %v177 = vld [vmem:[%s157 + $0x14] sm:$0xf]
      %v178 = vld [vmem:[%s157 + $0x18] sm:$0xf]
      %v179 = vld [vmem:[%s157 + $0x1c] sm:$0xf]
      %v180 = vld [vmem:[%s164] sm:$0xff]
      %v181 = vld [vmem:[%s164 + $0x8] sm:$0xff]
      %v182 = vld [vmem:[%s164 + $0x10] sm:$0xff]
      %v183 = vld [vmem:[%s164 + $0x18] sm:$0xff]
      %v184 = vld [vmem:[%s164 + $0x20] sm:$0xff]
      %v185 = vld [vmem:[%s164 + $0x28] sm:$0xff]
      %v186 = vld [vmem:[%s164 + $0x30] sm:$0xff]
      %v187 = vld [vmem:[%s164 + $0x38] sm:$0xff]
      %v188 = vld [vmem:[%s164 + $0x40] sm:$0xff]
      %v189 = vld [vmem:[%s164 + $0x48] sm:$0xff]
      %v190 = vld [vmem:[%s164 + $0x50] sm:$0xff]
      %v191 = vld [vmem:[%s164 + $0x58] sm:$0xff]
      %v192 = vld [vmem:[%s164 + $0x60] sm:$0xff]
      %v193 = vld [vmem:[%s164 + $0x68] sm:$0xff]
      %v194 = vld [vmem:[%s164 + $0x70] sm:$0xff]
      %v195 = vld [vmem:[%s164 + $0x78] sm:$0xff]
      %vm196 = vcmask 130048
      %v198 = vsel %vm196, %v172, 0
      %200 = vmatpush.msra.mxu0 0.0
      %201 = vmatpush.msra.mxu0 0.0
      %202 = vmatpush.msra.mxu0 0.0
      %203 = vmatpush.msra.mxu0 0.0
      %204 = vmatpush.msra.mxu0 0.0
      %205 = vmatpush.msra.mxu0 0.0
      %206 = vmatpush.msra.mxu0 0.0
      %207 = vmatpush.msra.mxu0 0.0
      %208 = vmatpush.msra.mxu0 0.0
      %209 = vmatpush.msra.mxu0 0.0
      %210 = vmatpush.msra.mxu0 0.0
      %211 = vmatpush.msra.mxu0 0.0
      %212 = vmatpush.msra.mxu0 0.0
      %213 = vmatpush.msra.mxu0 0.0
      %214 = vmatpush.msra.mxu0 %v181
      %215 = vmatpush.msra.mxu0 %v180
      %216 = vmatmul.f32.gmra.mxu0 %v198
      %v217 = vpop.f32.mrf.mxu0
      %v218 = vadd.f32 0.0, %v217
      %219 = vdwg.mxu0
      %v221 = vsel %vm196, %v173, 0
      %223 = vmatpush.msra.mxu0 0.0
      %224 = vmatpush.msra.mxu0 0.0
      %225 = vmatpush.msra.mxu0 0.0
      %226 = vmatpush.msra.mxu0 0.0
      %227 = vmatpush.msra.mxu0 0.0
      %228 = vmatpush.msra.mxu0 0.0
      %229 = vmatpush.msra.mxu0 0.0
      %230 = vmatpush.msra.mxu0 0.0
      %231 = vmatpush.msra.mxu0 0.0
      %232 = vmatpush.msra.mxu0 0.0
      %233 = vmatpush.msra.mxu0 0.0
      %234 = vmatpush.msra.mxu0 0.0
      %235 = vmatpush.msra.mxu0 0.0
      %236 = vmatpush.msra.mxu0 0.0
      %237 = vmatpush.msra.mxu0 %v183
      %238 = vmatpush.msra.mxu0 %v182
      %239 = vmatmul.f32.gmra.mxu0 %v221
      %v240 = vpop.f32.mrf.mxu0
      %v241 = vadd.f32 0.0, %v240
      %242 = vdwg.mxu0
      %v244 = vsel %vm196, %v174, 0
      %246 = vmatpush.msra.mxu0 0.0
      %247 = vmatpush.msra.mxu0 0.0
      %248 = vmatpush.msra.mxu0 0.0
      %249 = vmatpush.msra.mxu0 0.0
      %250 = vmatpush.msra.mxu0 0.0
      %251 = vmatpush.msra.mxu0 0.0
      %252 = vmatpush.msra.mxu0 0.0
      %253 = vmatpush.msra.mxu0 0.0
      %254 = vmatpush.msra.mxu0 0.0
      %255 = vmatpush.msra.mxu0 0.0
      %256 = vmatpush.msra.mxu0 0.0
      %257 = vmatpush.msra.mxu0 0.0
      %258 = vmatpush.msra.mxu0 0.0
      %259 = vmatpush.msra.mxu0 0.0
      %260 = vmatpush.msra.mxu0 %v185
      %261 = vmatpush.msra.mxu0 %v184
      %262 = vmatmul.f32.gmra.mxu0 %v244
      %v263 = vpop.f32.mrf.mxu0
      %v264 = vadd.f32 0.0, %v263
      %265 = vdwg.mxu0
      %v267 = vsel %vm196, %v175, 0
      %269 = vmatpush.msra.mxu0 0.0
      %270 = vmatpush.msra.mxu0 0.0
      %271 = vmatpush.msra.mxu0 0.0
      %272 = vmatpush.msra.mxu0 0.0
      %273 = vmatpush.msra.mxu0 0.0
      %274 = vmatpush.msra.mxu0 0.0
      %275 = vmatpush.msra.mxu0 0.0
      %276 = vmatpush.msra.mxu0 0.0
      %277 = vmatpush.msra.mxu0 0.0
      %278 = vmatpush.msra.mxu0 0.0
      %279 = vmatpush.msra.mxu0 0.0
      %280 = vmatpush.msra.mxu0 0.0
      %281 = vmatpush.msra.mxu0 0.0
      %282 = vmatpush.msra.mxu0 0.0
      %283 = vmatpush.msra.mxu0 %v187
      %284 = vmatpush.msra.mxu0 %v186
      %285 = vmatmul.f32.gmra.mxu0 %v267
      %v286 = vpop.f32.mrf.mxu0
      %v287 = vadd.f32 0.0, %v286
      %288 = vdwg.mxu0
      %v290 = vsel %vm196, %v176, 0
      %292 = vmatpush.msra.mxu0 0.0
      %293 = vmatpush.msra.mxu0 0.0
      %294 = vmatpush.msra.mxu0 0.0
      %295 = vmatpush.msra.mxu0 0.0
      %296 = vmatpush.msra.mxu0 0.0
      %297 = vmatpush.msra.mxu0 0.0
      %298 = vmatpush.msra.mxu0 0.0
      %299 = vmatpush.msra.mxu0 0.0
      %300 = vmatpush.msra.mxu0 0.0
      %301 = vmatpush.msra.mxu0 0.0
      %302 = vmatpush.msra.mxu0 0.0
      %303 = vmatpush.msra.mxu0 0.0
      %304 = vmatpush.msra.mxu0 0.0
      %305 = vmatpush.msra.mxu0 0.0
      %306 = vmatpush.msra.mxu0 %v189
      %307 = vmatpush.msra.mxu0 %v188
      %308 = vmatmul.f32.gmra.mxu0 %v290
      %v309 = vpop.f32.mrf.mxu0
      %v310 = vadd.f32 0.0, %v309
      %311 = vdwg.mxu0
      %v313 = vsel %vm196, %v177, 0
      %315 = vmatpush.msra.mxu0 0.0
      %316 = vmatpush.msra.mxu0 0.0
      %317 = vmatpush.msra.mxu0 0.0
      %318 = vmatpush.msra.mxu0 0.0
      %319 = vmatpush.msra.mxu0 0.0
      %320 = vmatpush.msra.mxu0 0.0
      %321 = vmatpush.msra.mxu0 0.0
      %322 = vmatpush.msra.mxu0 0.0
      %323 = vmatpush.msra.mxu0 0.0
      %324 = vmatpush.msra.mxu0 0.0
      %325 = vmatpush.msra.mxu0 0.0
      %326 = vmatpush.msra.mxu0 0.0
      %327 = vmatpush.msra.mxu0 0.0
      %328 = vmatpush.msra.mxu0 0.0
      %329 = vmatpush.msra.mxu0 %v191
      %330 = vmatpush.msra.mxu0 %v190
      %331 = vmatmul.f32.gmra.mxu0 %v313
      %v332 = vpop.f32.mrf.mxu0
      %v333 = vadd.f32 0.0, %v332
      %334 = vdwg.mxu0
      %v336 = vsel %vm196, %v178, 0
      %338 = vmatpush.msra.mxu0 0.0
      %339 = vmatpush.msra.mxu0 0.0
      %340 = vmatpush.msra.mxu0 0.0
      %341 = vmatpush.msra.mxu0 0.0
      %342 = vmatpush.msra.mxu0 0.0
      %343 = vmatpush.msra.mxu0 0.0
      %344 = vmatpush.msra.mxu0 0.0
      %345 = vmatpush.msra.mxu0 0.0
      %346 = vmatpush.msra.mxu0 0.0
      %347 = vmatpush.msra.mxu0 0.0
      %348 = vmatpush.msra.mxu0 0.0
      %349 = vmatpush.msra.mxu0 0.0
      %350 = vmatpush.msra.mxu0 0.0
      %351 = vmatpush.msra.mxu0 0.0
      %352 = vmatpush.msra.mxu0 %v193
      %353 = vmatpush.msra.mxu0 %v192
      %354 = vmatmul.f32.gmra.mxu0 %v336
      %v355 = vpop.f32.mrf.mxu0
      %v356 = vadd.f32 0.0, %v355
      %357 = vdwg.mxu0
      %v359 = vsel %vm196, %v179, 0
      %361 = vmatpush.msra.mxu0 0.0
      %362 = vmatpush.msra.mxu0 0.0
      %363 = vmatpush.msra.mxu0 0.0
      %364 = vmatpush.msra.mxu0 0.0
      %365 = vmatpush.msra.mxu0 0.0
      %366 = vmatpush.msra.mxu0 0.0
      %367 = vmatpush.msra.mxu0 0.0
      %368 = vmatpush.msra.mxu0 0.0
      %369 = vmatpush.msra.mxu0 0.0
      %370 = vmatpush.msra.mxu0 0.0
      %371 = vmatpush.msra.mxu0 0.0
      %372 = vmatpush.msra.mxu0 0.0
      %373 = vmatpush.msra.mxu0 0.0
      %374 = vmatpush.msra.mxu0 0.0
      %375 = vmatpush.msra.mxu0 %v195
      %376 = vmatpush.msra.mxu0 %v194
      %377 = vmatmul.f32.gmra.mxu0 %v359
      %v378 = vpop.f32.mrf.mxu0
      %v379 = vadd.f32 0.0, %v378
      %380 = vdwg.mxu0
      %vm381 = vcmask 125952
      %382 = vst.msk [vmem:[%s170] sm:$0xf] %vm381, %v218
      %383 = vst.msk [vmem:[%s170 + $0x4] sm:$0xf] %vm381, %v241
      %384 = vst.msk [vmem:[%s170 + $0x8] sm:$0xf] %vm381, %v264
      %385 = vst.msk [vmem:[%s170 + $0xc] sm:$0xf] %vm381, %v287
      %386 = vst.msk [vmem:[%s170 + $0x10] sm:$0xf] %vm381, %v310
      %387 = vst.msk [vmem:[%s170 + $0x14] sm:$0xf] %vm381, %v333
      %388 = vst.msk [vmem:[%s170 + $0x18] sm:$0xf] %vm381, %v356
      %389 = vst.msk [vmem:[%s170 + $0x1c] sm:$0xf] %vm381, %v379
      %s390 = smul.u32 8, %s13
      %p391 = scmp.lt.s32.totalorder %s390, 23
      %s392 = scalar_select %p391, %s390, 23
      %s393 = smul.addr %s392, 4
      %s394 = scalar_lea.vmem %s2, %s393
      // Predicated region
      $region29: #{tpu_custom_call.1} parent=27 // pred_check
        %p395 = pneg %p83
      $region30: #{tpu_custom_call.1} parent=27 // pred_check_branch
        %397 = sbr.rel (%p395) target = $region32
      $region31: #{tpu_custom_call.1} parent=27 // pred_region
        %s398 = smul.u32 8, %s13
      $region32: #{tpu_custom_call.1} parent=27 // pred_fallthru
        _
    $region28: #{tpu_custom_call.1} parent=5 // pred_fallthru
      _
    %p399 = scmp.le.s32.totalorder 2, %s8
    // Predicated region
    $region33: #{tpu_custom_call.1} parent=5 // pred_check
      %p400 = pneg %p399
    $region34: #{tpu_custom_call.1} parent=5 // pred_check_branch
      %402 = sbr.rel (%p400) target = $region36
    $region35: #{tpu_custom_call.1} parent=5 // pred_region
      %s403 = ssub.s32 %s8, 2
      // Predicated region
      $region37: #{tpu_custom_call.1} parent=35 // pred_check
        %p404 = pneg %p89
      $region38: #{tpu_custom_call.1} parent=35 // pred_check_branch
        %406 = sbr.rel (%p404) target = $region40
      $region39: #{tpu_custom_call.1} parent=35 // pred_region
        %s407 = smul.u32 8, %s14
        %p408 = scmp.lt.s32.totalorder %s407, 23
        %s409 = scalar_select %p408, %s407, 23
        %s410 = smul.addr %s409, 4
        %s411 = scalar_lea.vmem %s2, %s410
      $region40: #{tpu_custom_call.1} parent=35 // pred_fallthru
        _
    $region36: #{tpu_custom_call.1} parent=5 // pred_fallthru
      _
  $region6: #{tpu_custom_call.1} parent=0 // loop_footer
    %s12 = sadd.s32 1, %s8
  $region7: #{tpu_custom_call.1} parent=0 // loop_footer_branch
    %7 = sbr.rel target = $region3
  $region8: #{tpu_custom_call.1} parent=0 // loop_exit
    _

</llo_original>
